<compile_context>
chip_gen: v7x
topology: tpu7x:2x2x1
jax: 0.10.0
libtpu: 0.0.40
codegen_flags: <defaults>
</compile_context>

<pallas_src>
import jax
import jax.numpy as jnp
from jax import lax
from jax.experimental import pallas as pl
from jax.experimental.pallas import tpu as pltpu


def _make_loss_kernel(inv_div, t_r, total_rows, needs_mask, binary_mask):
    """Kernel over one (2, t_r, L) tile of x and y for one batch element."""
    inv_div = float(inv_div)

    def kernel(x_ref, y_ref, o_ref):
        t = pl.program_id(1)

        @pl.when(t == 0)
        def _init():
            o_ref[...] = jnp.zeros_like(o_ref)

        x0 = x_ref[0]          # (t_r, L)  channel 0 of x
        x1 = x_ref[1]          # (t_r, L)  channel 1 of x
        y0 = y_ref[0]          # (t_r, L)  channel 0 of y (mask)
        y1 = y_ref[1]          # (t_r, L)  channel 1 of y (regression target)

        pos = y0 == 1.0

        if binary_mask:
            # Single-log rewrite: exact when y0 is strictly {0.0, 1.0}
            # (which the reference's `if y==1` gating implies).
            sel = jnp.where(pos, x0, 1.0 - x0)
            w0 = jnp.where(pos, -10.0, -1.0)
            l = jnp.log(sel) * w0
        else:
            # General (fractional-y0) path: exact reference semantics, two logs.
            l = -(y0 * jnp.log(x0) * 10.0 + (1.0 - y0) * jnp.log(1.0 - x0))

        # Masked L1 term; the 1/(H ^ 2) scale is folded into the select constant.
        w1 = jnp.where(pos, inv_div, 0.0)
        l = l + jnp.abs(y1 - x1) * w1

        if needs_mask:  # last tile along the row axis may overhang the array
            rows = lax.broadcasted_iota(jnp.int32, l.shape, 0) + t * t_r
            l = jnp.where(rows < total_rows, l, 0.0)

        # One cheap sublane reduction per tile; accumulate lane-wise partials.
        o_ref[...] += jnp.sum(l, axis=0, keepdims=True)

    return kernel


def loss_forward(x, y, *, binary_mask=True):
    """x, y: (B, C, H, W) float arrays, C >= 2. Returns scalar float32.

    binary_mask=True assumes y[:,0] is exactly {0,1} (one log per element);
    set False for the exact two-log reference expression with fractional y0.
    """
    assert x.shape == y.shape and x.ndim == 4 and x.shape[1] >= 2
    B, C, H, W = x.shape
    x = x.astype(jnp.float32)
    y = y.astype(jnp.float32)

    # Lane-dense, copy-free reshape of the spatial dims.
    HW = H * W
    if HW % 128 == 0:
        L, R = 128, HW // 128
    else:
        L, R = HW, 1            # fallback: full (ragged) lane dim, still one tile
    x4 = x.reshape(B, C, R, L)  # contiguous reshape -> no HBM copy
    y4 = y.reshape(B, C, R, L)

    # Row-tile size: ~2 MiB per input tile (2 ch * 2048 * 128 * 4 B).
    CAP_ROWS = 2048
    t_r = R if R <= CAP_ROWS else CAP_ROWS
    g_hw = pl.cdiv(R, t_r)
    needs_mask = (R % t_r) != 0

    div = H ^ 2                 # reproduce the reference's XOR (not power!) bug
    inv_div = (1.0 / div) if div != 0 else float("inf")

    kernel = _make_loss_kernel(inv_div, t_r, R, needs_mask, binary_mask)

    # Channels {0,1} selected via the BlockSpec (channel block size 2, index 0);
    # batch dim squeezed out of the kernel view.
    in_spec = pl.BlockSpec((None, 2, t_r, L), lambda b, t: (b, 0, t, 0))
    out_spec = pl.BlockSpec((None, 1, L), lambda b, t: (b, 0, 0))

    n = B * HW
    partials = pl.pallas_call(
        kernel,
        out_shape=jax.ShapeDtypeStruct((B, 1, L), jnp.float32),
        grid=(B, g_hw),
        in_specs=[in_spec, in_spec],
        out_specs=out_spec,
        compiler_params=pltpu.CompilerParams(
            dimension_semantics=("parallel", "arbitrary")),
        cost_estimate=pl.CostEstimate(
            flops=10 * n,
            transcendentals=(n if binary_mask else 2 * n),
            bytes_accessed=4 * n * 4 + B * L * 4),
    )(x4, y4)

    # Tiny final reduction of per-batch, per-lane partials in plain JAX.
    return jnp.sum(partials)


def loss_reference(x, y):
    """Pure-JAX reference mirroring the PyTorch semantics."""
    H = x.shape[2]
    x0, x1 = x[:, 0], x[:, 1]
    y0, y1 = y[:, 0], y[:, 1]
    l0 = jnp.sum(-(y0 * jnp.log(x0) * 10.0 + (1.0 - y0) * jnp.log(1.0 - x0)))
    l1 = jnp.sum(jnp.where(y0 == 1.0, jnp.abs(y1 - x1), 0.0)) / float(H ^ 2)
    return l0 + l1


if __name__ == "__main__":
    key = jax.random.PRNGKey(0)
    k1, k2, k3 = jax.random.split(key, 3)

    B, C, Hh, W = 2, 2, 16, 16

    # x must lie strictly in (0, 1) on channel 0 for log() to be finite.
    x = jax.nn.sigmoid(jax.random.normal(k1, (B, C, Hh, W), dtype=jnp.float32))
    # y channel 0 is a binary mask (0.0 / 1.0), channel 1 a regression target.
    y0 = (jax.random.uniform(k2, (B, 1, Hh, W)) > 0.5).astype(jnp.float32)
    y1 = jax.random.uniform(k3, (B, 1, Hh, W), dtype=jnp.float32)
    y = jnp.concatenate([y0, y1], axis=1)

    ref = loss_reference(x, y)

    # Fast path: single log per element (valid since y0 is binary here).
    out_fast = jax.block_until_ready(loss_forward(x, y, binary_mask=True))
    assert jnp.isfinite(out_fast), "non-finite loss (fast path)"
    assert jnp.allclose(out_fast, ref, rtol=1e-5, atol=1e-3), (out_fast, ref)

    # Exact-semantics path: two logs, supports fractional y0 as well.
    out_exact = jax.block_until_ready(loss_forward(x, y, binary_mask=False))
    assert jnp.isfinite(out_exact), "non-finite loss (exact path)"
    assert jnp.allclose(out_exact, ref, rtol=1e-5, atol=1e-3), (out_exact, ref)

    print("KERNEL_OK")
</pallas_src>

<mosaic_0001>
module attributes {stable_mosaic.version = 11 : i64} {
  func.func @kernel(%arg0: i32, %arg1: i32, %arg2: memref<1x2x2x128xf32, #tpu.memory_space<vmem>>, %arg3: memref<1x2x2x128xf32, #tpu.memory_space<vmem>>, %arg4: memref<1x1x128xf32, #tpu.memory_space<vmem>>) attributes {dimension_semantics = [#tpu.dimension_semantics<parallel>, #tpu.dimension_semantics<arbitrary>], iteration_bounds = array<i64: 2, 1>, scalar_prefetch = 0 : i64, scratch_operands = 0 : i64, tpu.core_type = #tpu.core_type<tc>, window_params = [{transform_indices = @transform_0, window_bounds = array<i64: 1, 2, 2, 128>}, {transform_indices = @transform_1, window_bounds = array<i64: 1, 2, 2, 128>}, {transform_indices = @transform_2, window_bounds = array<i64: 1, 1, 128>}]} {
    %c0_i32 = arith.constant 0 : i32
    %0 = arith.cmpi eq, %arg1, %c0_i32 : i32
    %1 = arith.extui %0 : i1 to i32
    %c0_i32_0 = arith.constant 0 : i32
    %2 = arith.cmpi ne, %1, %c0_i32_0 : i32
    scf.if %2 {
      %cst_27 = arith.constant 0.000000e+00 : f32
      %36 = vector.broadcast %cst_27 : f32 to vector<1x128xf32>
      %c0_28 = arith.constant 0 : index
      %c0_29 = arith.constant 0 : index
      %c0_30 = arith.constant 0 : index
      %37 = vector.load %arg4[%c0_28, %c0_29, %c0_30] : memref<1x1x128xf32, #tpu.memory_space<vmem>>, vector<1x1x128xf32>
      %38 = vector.shape_cast %37 : vector<1x1x128xf32> to vector<1x128xf32>
      %39 = vector.shape_cast %36 : vector<1x128xf32> to vector<1x1x128xf32>
      tpu.vector_store %arg4[%c0_28, %c0_29, %c0_30], %39 {strides = array<i32>} : memref<1x1x128xf32, #tpu.memory_space<vmem>>, vector<1x1x128xf32>,
    } else {
    }
    %c0 = arith.constant 0 : index
    %c0_1 = arith.constant 0 : index
    %c0_2 = arith.constant 0 : index
    %c0_3 = arith.constant 0 : index
    %3 = vector.load %arg2[%c0, %c0_1, %c0_2, %c0_3] : memref<1x2x2x128xf32, #tpu.memory_space<vmem>>, vector<1x1x2x128xf32>
    %4 = vector.shape_cast %3 : vector<1x1x2x128xf32> to vector<2x128xf32>
    %c0_4 = arith.constant 0 : index
    %c1 = arith.constant 1 : index
    %c0_5 = arith.constant 0 : index
    %c0_6 = arith.constant 0 : index
    %5 = vector.load %arg2[%c0_4, %c1, %c0_5, %c0_6] : memref<1x2x2x128xf32, #tpu.memory_space<vmem>>, vector<1x1x2x128xf32>
    %6 = vector.shape_cast %5 : vector<1x1x2x128xf32> to vector<2x128xf32>
    %c0_7 = arith.constant 0 : index
    %c0_8 = arith.constant 0 : index
    %c0_9 = arith.constant 0 : index
    %c0_10 = arith.constant 0 : index
    %7 = vector.load %arg3[%c0_7, %c0_8, %c0_9, %c0_10] : memref<1x2x2x128xf32, #tpu.memory_space<vmem>>, vector<1x1x2x128xf32>
    %8 = vector.shape_cast %7 : vector<1x1x2x128xf32> to vector<2x128xf32>
    %c0_11 = arith.constant 0 : index
    %c1_12 = arith.constant 1 : index
    %c0_13 = arith.constant 0 : index
    %c0_14 = arith.constant 0 : index
    %9 = vector.load %arg3[%c0_11, %c1_12, %c0_13, %c0_14] : memref<1x2x2x128xf32, #tpu.memory_space<vmem>>, vector<1x1x2x128xf32>
    %10 = vector.shape_cast %9 : vector<1x1x2x128xf32> to vector<2x128xf32>
    %cst = arith.constant 1.000000e+00 : f32
    %11 = vector.broadcast %cst : f32 to vector<2x128xf32>
    %12 = arith.cmpf oeq, %8, %11 : vector<2x128xf32>
    %cst_15 = arith.constant 1.000000e+00 : f32
    %13 = vector.broadcast %cst_15 : f32 to vector<2x128xf32>
    %14 = arith.subf %13, %4 : vector<2x128xf32>
    %15 = arith.select %12, %4, %14 : vector<2x128xi1>, vector<2x128xf32>
    %cst_16 = arith.constant -1.000000e+01 : f32
    %cst_17 = arith.constant -1.000000e+00 : f32
    %16 = vector.broadcast %cst_16 : f32 to vector<2x128xf32>
    %17 = vector.broadcast %cst_17 : f32 to vector<2x128xf32>
    %18 = arith.select %12, %16, %17 : vector<2x128xi1>, vector<2x128xf32>
    %19 = math.log %15 : vector<2x128xf32>
    %20 = arith.mulf %19, %18 : vector<2x128xf32>
    %cst_18 = arith.constant 0.055555556 : f32
    %cst_19 = arith.constant 0.000000e+00 : f32
    %21 = vector.broadcast %cst_18 : f32 to vector<2x128xf32>
    %22 = vector.broadcast %cst_19 : f32 to vector<2x128xf32>
    %23 = arith.select %12, %21, %22 : vector<2x128xi1>, vector<2x128xf32>
    %24 = arith.subf %10, %6 : vector<2x128xf32>
    %25 = math.absf %24 : vector<2x128xf32>
    %26 = arith.mulf %25, %23 : vector<2x128xf32>
    %27 = arith.addf %20, %26 : vector<2x128xf32>
    %c0_20 = arith.constant 0 : index
    %c0_21 = arith.constant 0 : index
    %c0_22 = arith.constant 0 : index
    %28 = vector.load %arg4[%c0_20, %c0_21, %c0_22] : memref<1x1x128xf32, #tpu.memory_space<vmem>>, vector<1x1x128xf32>
    %29 = vector.shape_cast %28 : vector<1x1x128xf32> to vector<1x128xf32>
    %cst_23 = arith.constant dense<0.000000e+00> : vector<128xf32>
    %30 = vector.multi_reduction <add>, %27, %cst_23 [0] : vector<2x128xf32> to vector<128xf32>
    %31 = vector.shape_cast %30 : vector<128xf32> to vector<1x128xf32>
    %32 = arith.addf %29, %31 : vector<1x128xf32>
    %c0_24 = arith.constant 0 : index
    %c0_25 = arith.constant 0 : index
    %c0_26 = arith.constant 0 : index
    %33 = vector.load %arg4[%c0_24, %c0_25, %c0_26] : memref<1x1x128xf32, #tpu.memory_space<vmem>>, vector<1x1x128xf32>
    %34 = vector.shape_cast %33 : vector<1x1x128xf32> to vector<1x128xf32>
    %35 = vector.shape_cast %32 : vector<1x128xf32> to vector<1x1x128xf32>
    tpu.vector_store %arg4[%c0_24, %c0_25, %c0_26], %35 {strides = array<i32>} : memref<1x1x128xf32, #tpu.memory_space<vmem>>, vector<1x1x128xf32>,
    return
  }
  func.func @transform_0(%arg0: i32, %arg1: i32) -> (i32, i32, i32, i32) {
    %c0_i32 = arith.constant 0 : i32
    %c0_i32_0 = arith.constant 0 : i32
    %c0_i32_1 = arith.constant 0 : i32
    return %arg0, %c0_i32, %arg1, %c0_i32_0 : i32, i32, i32, i32
  }
  func.func @transform_1(%arg0: i32, %arg1: i32) -> (i32, i32, i32, i32) {
    %c0_i32 = arith.constant 0 : i32
    %c0_i32_0 = arith.constant 0 : i32
    %c0_i32_1 = arith.constant 0 : i32
    return %arg0, %c0_i32, %arg1, %c0_i32_0 : i32, i32, i32, i32
  }
  func.func @transform_2(%arg0: i32, %arg1: i32) -> (i32, i32, i32) {
    %c0_i32 = arith.constant 0 : i32
    %c0_i32_0 = arith.constant 0 : i32
    %c0_i32_1 = arith.constant 0 : i32
    return %arg0, %c0_i32, %c0_i32_0 : i32, i32, i32
  }
}

</mosaic_0001>

<llo_original>
// kernel: tpu_custom_call.1
$region0: #{tpu_custom_call.1}
  #allocation0 [shape = 'u32[]', space=smem, size = 0x4, offset = 0x4, fixed_abs, tag = 'smem constant byte address 0x4 - core index']
  #allocation1 [shape = 'u32[144,128]{1,0:T(1,128)}', space=vmem, size = 0x12000, scoped, tag = 'internal scratch']
  %s0 = inlined_call_operand.hbm [shape: f32[2,2,2,128], index: 0, kind: input, shape index: {}]
  %s1 = inlined_call_operand.hbm [shape: f32[2,2,2,128], index: 1, kind: input, shape index: {}]
  %s2 = inlined_call_operand.hbm [shape: f32[2,1,128], index: 2, kind: output, shape index: {}]
  %s3 = sld [smem:[#allocation0]]
  $region53: #{tpu_custom_call.1} parent=0
    _
  %s5 = ssub.s32 1, %s3
  %s6 = scalar_select 0, %s5, %s3
  $region1: #{tpu_custom_call.1} parent=0
    #allocation2 [shape = 'u8[4096]{0}', space=vmem, size = 0x1000, scoped, tag = 'input window, operand 0']
    #allocation3 [shape = 's32[2]{0}', space=sflag, size = 0x8, scoped, tag = 'scoped memory for tpu_custom_call.1']
    #allocation4 [shape = 's32[2]{0}', space=sflag, size = 0x8, scoped, tag = 'scoped memory for tpu_custom_call.1']
    #allocation5 [shape = 'u8[4096]{0}', space=vmem, size = 0x1000, scoped, tag = 'input window, operand 1']
    #allocation6 [shape = 's32[2]{0}', space=sflag, size = 0x8, scoped, tag = 'scoped memory for tpu_custom_call.1']
    #allocation7 [shape = 'u8[1024]{0}', space=vmem, size = 0x400, scoped, tag = 'output window, operand 0']
    %7 = vsyncpa [#allocation3], 0
    %s8 = scalar_lea.sflag [#allocation3], 1
    %9 = vsyncpa %s8, 0
    %10 = vsyncpa [#allocation6], 0
    %s11 = scalar_lea.sflag [#allocation6], 1
    %12 = vsyncpa %s11, 0
    %13 = vsyncpa [#allocation4], 0
    %s14 = scalar_lea.sflag [#allocation4], 1
    %15 = vsyncpa %s14, 0
    loop: start=0, step=1, limit=4
    $region2: #{tpu_custom_call.1} parent=1 // loop_pre_header
      _
    $region3: #{tpu_custom_call.1} parent=1 // loop_header
      %s17 = sphi 0, %s21
      %p18 = scmp.ge.s32.totalorder %s17, 4
      %s24 = sphi 0, %s36
      %s25 = sphi 0, %s32
      %s26 = sphi 0, %s24
      %s27 = sphi 0, %s25
      %s28 = sphi 0, %s26
      %s29 = sphi 0, %s27
      %s41 = sphi 0, %s43
      %s44 = sphi 0, %s41
      %s45 = sphi 0, %s44
      %s61 = sphi 0, %s45
      %s69 = sphi 0, %s71
      %s72 = sphi 0, %s69
      %s73 = sphi 0, %s72
      %s89 = sphi 0, %s73
      %s95 = sphi 0, %s97
      %s98 = sphi 0, %s95
      %s99 = sphi 0, %s98
      %s115 = sphi 0, %s99
    $region4: #{tpu_custom_call.1} parent=1 // loop_header_branch
      %20 = sbr.rel (%p18) target = $region8
    $region5: #{tpu_custom_call.1} parent=1 // loop_body
      %s22 = ssub.s32 %s17, 1
      %s23 = ssub.s32 %s17, 2
      %s30 = sadd.s32 1, %s25
      %p31 = scmp.ge.s32.totalorder %s30, 1
      %s32 = scalar_select %p31, 0, %s30
      %s33 = sadd.s32 1, %s24
      %s34 = scalar_select %p31, %s33, %s24
      %p35 = scmp.ge.s32.totalorder %s34, 2
      %s36 = scalar_select %p35, 0, %s34
      %s37 = ssub.s32 %s24, %s36
      %s38 = ssub.s32 %s25, %s32
      %s39 = sor.u32 %s37, %s38
      %p40 = scmp.eq.s32.totalorder %s39, 0
      %s42 = sadd.s32 %s41, 1
      %s43 = scalar_select %p40, %s41, %s42
      %p46 = pneg %p40
      %p47 = scmp.eq.s32.totalorder %s17, 1
      %p48 = por %p46, %p47
      %p49 = scmp.ne.s32.totalorder %s41, %s44
      %p50 = scmp.eq.s32.totalorder %s17, 0
      %p51 = por %p49, %p50
      %p52 = scmp.ne.s32.totalorder %s41, %s44
      %p53 = scmp.eq.s32.totalorder %s22, 1
      %p54 = por %p52, %p53
      %p55 = scmp.ne.s32.totalorder %s44, %s45
      %p56 = scmp.eq.s32.totalorder %s22, 0
      %p57 = por %p55, %p56
      %p58 = scmp.ne.s32.totalorder %s44, %s45
      %p59 = scmp.eq.s32.totalorder %s23, 1
      %p60 = por %p58, %p59
      %p62 = scmp.ne.s32.totalorder %s45, %s61
      %p63 = scmp.eq.s32.totalorder %s23, 0
      %p64 = por %p62, %p63
      %s65 = ssub.s32 %s24, %s36
      %s66 = ssub.s32 %s25, %s32
      %s67 = sor.u32 %s65, %s66
      %p68 = scmp.eq.s32.totalorder %s67, 0
      %s70 = sadd.s32 %s69, 1
      %s71 = scalar_select %p68, %s69, %s70
      %p74 = pneg %p68
      %p75 = scmp.eq.s32.totalorder %s17, 1
      %p76 = por %p74, %p75
      %p77 = scmp.ne.s32.totalorder %s69, %s72
      %p78 = scmp.eq.s32.totalorder %s17, 0
      %p79 = por %p77, %p78
      %p80 = scmp.ne.s32.totalorder %s69, %s72
      %p81 = scmp.eq.s32.totalorder %s22, 1
      %p82 = por %p80, %p81
      %p83 = scmp.ne.s32.totalorder %s72, %s73
      %p84 = scmp.eq.s32.totalorder %s22, 0
      %p85 = por %p83, %p84
      %p86 = scmp.ne.s32.totalorder %s72, %s73
      %p87 = scmp.eq.s32.totalorder %s23, 1
      %p88 = por %p86, %p87
      %p90 = scmp.ne.s32.totalorder %s73, %s89
      %p91 = scmp.eq.s32.totalorder %s23, 0
      %p92 = por %p90, %p91
      %s93 = ssub.s32 %s24, %s36
      %p94 = scmp.eq.s32.totalorder %s93, 0
      %s96 = sadd.s32 %s95, 1
      %s97 = scalar_select %p94, %s95, %s96
      %p100 = pneg %p94
      %p101 = scmp.eq.s32.totalorder %s17, 1
      %p102 = por %p100, %p101
      %p103 = scmp.ne.s32.totalorder %s95, %s98
      %p104 = scmp.eq.s32.totalorder %s17, 0
      %p105 = por %p103, %p104
      %p106 = scmp.ne.s32.totalorder %s95, %s98
      %p107 = scmp.eq.s32.totalorder %s22, 1
      %p108 = por %p106, %p107
      %p109 = scmp.ne.s32.totalorder %s98, %s99
      %p110 = scmp.eq.s32.totalorder %s22, 0
      %p111 = por %p109, %p110
      %p112 = scmp.ne.s32.totalorder %s98, %s99
      %p113 = scmp.eq.s32.totalorder %s23, 1
      %p114 = por %p112, %p113
      %p116 = scmp.ne.s32.totalorder %s99, %s115
      %p117 = scmp.eq.s32.totalorder %s23, 0
      %p118 = por %p116, %p117
      %p119 = scmp.le.s32.totalorder 1, %s17
      %p120 = scmp.lt.s32.totalorder %s17, 3
      %p121 = pnand %p119, %p120
      %p122 = pneg %p121
      // Predicated region
      $region9: #{tpu_custom_call.1} parent=5 // pred_check
        _
      $region10: #{tpu_custom_call.1} parent=5 // pred_check_branch
        %124 = sbr.rel (%p121) target = $region12
      $region11: #{tpu_custom_call.1} parent=5 // pred_region
        %s125 = ssub.s32 %s17, 1
      $region12: #{tpu_custom_call.1} parent=5 // pred_fallthru
        _
      %p126 = scmp.lt.s32.totalorder %s17, 2
      // Predicated region
      $region13: #{tpu_custom_call.1} parent=5 // pred_check
        %p127 = pneg %p126
      $region14: #{tpu_custom_call.1} parent=5 // pred_check_branch
        %129 = sbr.rel (%p127) target = $region16
      $region15: #{tpu_custom_call.1} parent=5 // pred_region
        // Predicated region
        $region17: #{tpu_custom_call.1} parent=15 // pred_check
          %p130 = pneg %p51
        $region18: #{tpu_custom_call.1} parent=15 // pred_check_branch
          %132 = sbr.rel (%p130) target = $region20
        $region19: #{tpu_custom_call.1} parent=15 // pred_region
          %s133 = sand.u32 %s41, 1
          %s134 = scalar_lea.sflag [#allocation3], %s133
          %s135 = sand.u32 %s41, 1
          %s136 = smul.addr %s135, 4
          %s137 = scalar_lea.vmem [#allocation2], %s136
          %s139 = ssub.s32 64, 64
          %140 = vsyncadd %s134, %s139
          %s141 = smul.addr %s24, 2
          %s142 = sadd.s32 %s25, %s141
          %s143 = smul.addr %s142, 32
          %s144 = scalar_lea.hbm %s0, %s143
          %s145 = sshll.u32 %s137, 4
          %s146 = int_to_ptr.vmem [resolvable:$true] %s145
          %151 = dma.hbm_to_vmem [thread:$0]  %s144, 64, %s146, %s134, 32, 32, 2
        $region20: #{tpu_custom_call.1} parent=15 // pred_fallthru
          _
        // Predicated region
        $region21: #{tpu_custom_call.1} parent=15 // pred_check
          %p152 = pneg %p79
        $region22: #{tpu_custom_call.1} parent=15 // pred_check_branch
          %154 = sbr.rel (%p152) target = $region24
        $region23: #{tpu_custom_call.1} parent=15 // pred_region
          %s155 = sand.u32 %s69, 1
          %s156 = scalar_lea.sflag [#allocation6], %s155
          %s157 = sand.u32 %s69, 1
          %s158 = smul.addr %s157, 4
          %s159 = scalar_lea.vmem [#allocation5], %s158
          %s161 = ssub.s32 64, 64
          %162 = vsyncadd %s156, %s161
          %s163 = smul.addr %s24, 2
          %s164 = sadd.s32 %s25, %s163
          %s165 = smul.addr %s164, 32
          %s166 = scalar_lea.hbm %s1, %s165
          %s167 = sshll.u32 %s159, 4
          %s168 = int_to_ptr.vmem [resolvable:$true] %s167
          %173 = dma.hbm_to_vmem [thread:$0]  %s166, 64, %s168, %s156, 32, 32, 2
        $region24: #{tpu_custom_call.1} parent=15 // pred_fallthru
          _
      $region16: #{tpu_custom_call.1} parent=5 // pred_fallthru
        _
      %p174 = scmp.le.s32.totalorder 1, %s17
      %p175 = scmp.lt.s32.totalorder %s17, 3
      %p176 = pnand %p174, %p175
      %p177 = pneg %p176
      // Predicated region
      $region25: #{tpu_custom_call.1} parent=5 // pred_check
        _
      $region26: #{tpu_custom_call.1} parent=5 // pred_check_branch
        %179 = sbr.rel (%p176) target = $region28
      $region27: #{tpu_custom_call.1} parent=5 // pred_region
        %s180 = ssub.s32 %s17, 1
        %s181 = sand.u32 %s44, 1
        %s182 = scalar_lea.sflag [#allocation3], %s181
        %s183 = sand.u32 %s44, 1
        %s184 = smul.addr %s183, 4
        %s185 = scalar_lea.vmem [#allocation2], %s184
        // Predicated region
        $region29: #{tpu_custom_call.1} parent=27 // pred_check
          %p186 = pneg %p57
        $region30: #{tpu_custom_call.1} parent=27 // pred_check_branch
          %188 = sbr.rel (%p186) target = $region32
        $region31: #{tpu_custom_call.1} parent=27 // pred_region
          %189 = dma.done %s182, 64
        $region32: #{tpu_custom_call.1} parent=27 // pred_fallthru
          _
        %s190 = sand.u32 %s72, 1
        %s191 = scalar_lea.sflag [#allocation6], %s190
        %s192 = sand.u32 %s72, 1
        %s193 = smul.addr %s192, 4
        %s194 = scalar_lea.vmem [#allocation5], %s193
        // Predicated region
        $region33: #{tpu_custom_call.1} parent=27 // pred_check
          %p195 = pneg %p85
        $region34: #{tpu_custom_call.1} parent=27 // pred_check_branch
          %197 = sbr.rel (%p195) target = $region36
        $region35: #{tpu_custom_call.1} parent=27 // pred_region
          %198 = dma.done %s191, 64
        $region36: #{tpu_custom_call.1} parent=27 // pred_fallthru
          _
        %s199 = sand.u32 %s44, 1
        %s200 = scalar_lea.sflag [#allocation3], %s199
        %s201 = sand.u32 %s44, 1
        %s202 = smul.addr %s201, 4
        %s203 = scalar_lea.vmem [#allocation2], %s202
        %p204 = pneg %p57
        %p205 = pneg %p54
        %s206 = sand.u32 %s72, 1
        %s207 = scalar_lea.sflag [#allocation6], %s206
        %s208 = sand.u32 %s72, 1
        %s209 = smul.addr %s208, 4
        %s210 = scalar_lea.vmem [#allocation5], %s209
        %p211 = pneg %p85
        %p212 = pneg %p82
        %p213 = pneg %p111
        %p214 = pneg %p108
        %s215 = sand.u32 %s98, 1
        %s216 = scalar_lea.sflag [#allocation4], %s215
        %s217 = sand.u32 %s98, 1
        %s218 = scalar_lea.vmem [#allocation7], %s217
        %p219 = scmp.eq.s32.totalorder %s27, 0
        // Predicated region
        $region37: #{tpu_custom_call.1} parent=27 // pred_check
          %p220 = pneg %p219
        $region38: #{tpu_custom_call.1} parent=27 // pred_check_branch
          %222 = sbr.rel (%p220) target = $region40
        $region39: #{tpu_custom_call.1} parent=27 // pred_region
          %223 = vst [vmem:[%s218] sm:$0x1] 0.0
        $region40: #{tpu_custom_call.1} parent=27 // pred_fallthru
          _
        %v224 = vld [vmem:[%s185] sm:$0x3]
        %s225 = scalar_lea.vmem %s185, 2 [#allocation2]
        %v226 = vld [vmem:[%s225] sm:$0x3]
        %v227 = vld [vmem:[%s194] sm:$0x3]
        %s228 = scalar_lea.vmem %s194, 2 [#allocation5]
        %v229 = vld [vmem:[%s228] sm:$0x3]
        %vm230 = vcmp.eq.f32.partialorder %v227, 1.0
        %v231 = vsub.f32 1.0, %v224
        %v232 = vsel %vm230, %v224, %v231
        %v233 = vsel %vm230, -10.0, -1.0
        %v234 = vlog2.pop %v232
        %v235 = vmul.f32 %v234, 0.6931472
        %v236 = vmul.f32 %v235, %v233
        %v237 = vsel %vm230, 0.055555556, 0.0
        %v238 = vsub.f32 %v229, %v226
        %v239 = vand.u32 2147483647, %v238
        %v240 = vmul.f32 %v239, %v237
        %v241 = vadd.f32 %v236, %v240
        %v242 = vld [vmem:[%s218] sm:$0x1]
        %vm243 = vcmask 1041408
        %v244 = vsel %vm243, %v241, 0.0
        %v245 = vrot.slane %v244, 4
        %v246 = vadd.f32 %v244, %v245
        %v247 = vrot.slane %v246, 2
        %v248 = vadd.f32 %v246, %v247
        %v249 = vrot.slane %v248, 1
        %v250 = vadd.f32 %v248, %v249
        %v251 = vadd.f32 %v242, %v250
        %252 = vst [vmem:[%s218] sm:$0x1] %v251
        %s253 = sand.u32 %s98, 1
        %s254 = scalar_lea.sflag [#allocation4], %s253
        %s255 = sand.u32 %s98, 1
        %s256 = scalar_lea.vmem [#allocation7], %s255
        // Predicated region
        $region41: #{tpu_custom_call.1} parent=27 // pred_check
          %p257 = pneg %p108
        $region42: #{tpu_custom_call.1} parent=27 // pred_check_branch
          %259 = sbr.rel (%p257) target = $region44
        $region43: #{tpu_custom_call.1} parent=27 // pred_region
          %s261 = ssub.s32 16, 16
          %262 = vsyncadd %s254, %s261
          %s263 = smul.addr %s26, 16
          %s264 = scalar_lea.hbm %s2, %s263
          %s266 = sshll.u32 %s256, 4
          %s267 = int_to_ptr.vmem [resolvable:$true] %s266
          %269 = dma.vmem_to_hbm [thread:$0]  %s267, 16, %s264, %s254
        $region44: #{tpu_custom_call.1} parent=27 // pred_fallthru
          _
      $region28: #{tpu_custom_call.1} parent=5 // pred_fallthru
        _
      %p270 = scmp.le.s32.totalorder 2, %s17
      // Predicated region
      $region45: #{tpu_custom_call.1} parent=5 // pred_check
        %p271 = pneg %p270
      $region46: #{tpu_custom_call.1} parent=5 // pred_check_branch
        %273 = sbr.rel (%p271) target = $region48
      $region47: #{tpu_custom_call.1} parent=5 // pred_region
        %s274 = ssub.s32 %s17, 2
        // Predicated region
        $region49: #{tpu_custom_call.1} parent=47 // pred_check
          %p275 = pneg %p114
        $region50: #{tpu_custom_call.1} parent=47 // pred_check_branch
          %277 = sbr.rel (%p275) target = $region52
        $region51: #{tpu_custom_call.1} parent=47 // pred_region
          %s278 = sand.u32 %s99, 1
          %s279 = scalar_lea.sflag [#allocation4], %s278
          %s280 = sand.u32 %s99, 1
          %s281 = scalar_lea.vmem [#allocation7], %s280
          %282 = dma.done %s279, 16
        $region52: #{tpu_custom_call.1} parent=47 // pred_fallthru
          _
      $region48: #{tpu_custom_call.1} parent=5 // pred_fallthru
        _
    $region6: #{tpu_custom_call.1} parent=1 // loop_footer
      %s21 = sadd.s32 1, %s17
    $region7: #{tpu_custom_call.1} parent=1 // loop_footer_branch
      %16 = sbr.rel target = $region3
    $region8: #{tpu_custom_call.1} parent=1 // loop_exit
      _
    %283 = vsyncpa [#allocation3], 1
    %s284 = scalar_lea.sflag [#allocation3], 1
    %285 = vsyncpa %s284, 1
    %286 = vsyncpa [#allocation6], 1
    %s287 = scalar_lea.sflag [#allocation6], 1
    %288 = vsyncpa %s287, 1
    %289 = vsyncpa [#allocation4], 1
    %s290 = scalar_lea.sflag [#allocation4], 1
    %291 = vsyncpa %s290, 1

</llo_original>
